<compile_context>
chip_gen: v5e
topology: v5e:2x2
jax: 0.10.0
libtpu: 0.0.40
codegen_flags: <defaults>
</compile_context>

<pallas_src>
import functools

import jax
import jax.numpy as jnp
from jax.experimental import pallas as pl
from jax.experimental.pallas import tpu as pltpu

LANES = 128
MAX_ROW_TILE = 1024   # 1024 x 128 x 4B = 512 KiB / input tile.


def _focal_loss_kernel(x_ref, t_ref, o_ref, *, gamma, row_tile, num_tiles,
                       tiles_per_seg, rem_last, has_overflow, binary_targets):
    s = pl.program_id(0)          # parallel segment (megacore split on v7x)
    i = pl.program_id(1)          # sequential reduction step within segment

    # The output block index depends only on `s`, so it stays resident in VMEM
    # across the whole reduction axis and acts as the accumulator (P3).
    @pl.when(i == 0)
    def _():
        o_ref[...] = jnp.zeros_like(o_ref)

    x = x_ref[...].astype(jnp.float32)
    t = t_ref[...].astype(jnp.float32)

    # Numerically-stable BCE with logits (matches torch's formulation):
    #   bce = relu(x) - x*t + log1p(exp(-|x|))       -> 2 EUP ops (exp, log1p)
    e = jnp.exp(-jnp.abs(x))
    bce = jnp.maximum(x, 0.0) - x * t + jnp.log1p(e)

    if binary_targets:
        # pt = exp(-bce) = exp(x*t - relu(x)) / (1 + exp(-|x|)).  For hard
        # targets t in {0,1} the numerator is 1 when sign(x) agrees with t and
        # exp(-|x|) otherwise, so the third transcendental is replaced by a
        # select + approximate reciprocal (EUP is the binding slot on v7x).
        mismatch = jnp.logical_xor(x >= 0.0, t >= 0.5)
        pt = jnp.where(mismatch, e, 1.0) * pl.reciprocal(1.0 + e, approx=True)
    else:
        pt = jnp.exp(-bce)        # generic (soft-target) path: 3rd EUP op

    one_m_pt = 1.0 - pt
    if isinstance(gamma, int):
        f = one_m_pt ** gamma * bce                 # integer_pow -> VPU muls
    else:
        # float gamma lowers to exp(gamma*log(.)); clamp so pt ~= 1 can't NaN.
        f = jnp.maximum(one_m_pt, 0.0) ** gamma * bce

    def tile_partial(v):
        # (row_tile, 128) -> (1, 8, 128) partial sums: the reshape is
        # vreg-granular (free) and the reduce is pure VALU vreg adds.
        pad_rows = (-row_tile) % 8
        if pad_rows:
            v = jnp.concatenate(
                [v, jnp.zeros((pad_rows, LANES), v.dtype)], axis=0)
        return v.reshape(-1, 8, LANES).sum(axis=0)[None]

    blk = s * tiles_per_seg + i
    last_blk = num_tiles - 1
    mask_needed = rem_last < row_tile * LANES       # static Python bool

    if mask_needed:
        @pl.when(blk == last_blk)
        def _():
            # Tail mask from *local* indices only: max value is
            # row_tile*LANES - 1 <= 131071, so no int32 overflow ever.
            rows = jax.lax.broadcasted_iota(jnp.int32, (row_tile, LANES), 0)
            lanes = jax.lax.broadcasted_iota(jnp.int32, (row_tile, LANES), 1)
            valid = (rows * LANES + lanes) < rem_last
            o_ref[...] += tile_partial(jnp.where(valid, f, 0.0))

        interior = blk != last_blk
        if has_overflow:
            interior = jnp.logical_and(interior, blk < num_tiles)

        @pl.when(interior)
        def _():
            o_ref[...] += tile_partial(f)
    else:
        if has_overflow:
            @pl.when(blk < num_tiles)
            def _():
                o_ref[...] += tile_partial(f)
        else:
            o_ref[...] += tile_partial(f)


def focal_loss(inputs, targets, *, alpha=1.0, gamma=2, binary_targets=True):
    """Mean focal loss over logits `inputs` and labels `targets`.

    `binary_targets=True` assumes targets are hard {0,1} labels (the usual
    focal-loss setting) and saves one transcendental per element; pass
    `binary_targets=False` for soft targets (exact exp(-bce) path).
    """
    assert inputs.shape == targets.shape
    n_elem = inputs.size
    if n_elem == 0:                    # torch.mean of an empty tensor -> nan
        return jnp.float32(jnp.nan)

    # Integer-valued gamma -> Python int: integer_pow (VPU multiplies) instead
    # of exp(gamma*log(1-pt)) on the EUP, and no log(0) edge case.
    if isinstance(gamma, float) and float(gamma).is_integer():
        gamma = int(gamma)

    x = inputs.reshape(-1)
    t = targets.reshape(-1)

    # Lane-dense (rows, 128) slab.  Only a <128-element pad is ever added (and
    # only when n_elem is not lane-aligned); reshapes are free bitcasts.  The
    # ragged last grid block + in-kernel tail mask handle everything else.
    pad = (-n_elem) % LANES
    if pad:
        x = jnp.pad(x, (0, pad))
        t = jnp.pad(t, (0, pad))
    n_rows = (n_elem + pad) // LANES
    x = x.reshape(n_rows, LANES)
    t = t.reshape(n_rows, LANES)

    # Full-extent block for small inputs (exempt from the (8,128) rule),
    # otherwise a 1024-row tile (multiple of 16: bf16-safe).
    row_tile = n_rows if n_rows <= MAX_ROW_TILE else MAX_ROW_TILE
    num_tiles = pl.cdiv(n_rows, row_tile)

    # Two parallel segments whenever there is enough work (v7x: 2 TensorCores;
    # harmless on v5e/v6e).  Odd tile counts are handled by clamping the
    # index_map and gating the overflow block in-kernel (no padding).
    segments = 2 if num_tiles >= 2 else 1
    tiles_per_seg = pl.cdiv(num_tiles, segments)
    has_overflow = segments * tiles_per_seg > num_tiles

    # Valid element count inside the last block (static, < row_tile*LANES+1).
    rem_last = n_elem - (num_tiles - 1) * row_tile * LANES

    if has_overflow:
        def in_idx(s, i):
            return (jnp.minimum(s * tiles_per_seg + i, num_tiles - 1), 0)
    else:
        def in_idx(s, i):
            return (s * tiles_per_seg + i, 0)

    kernel = functools.partial(
        _focal_loss_kernel,
        gamma=gamma, row_tile=row_tile, num_tiles=num_tiles,
        tiles_per_seg=tiles_per_seg, rem_last=rem_last,
        has_overflow=has_overflow, binary_targets=binary_targets)

    out = pl.pallas_call(
        kernel,
        out_shape=jax.ShapeDtypeStruct((segments, 8, LANES), jnp.float32),
        grid_spec=pltpu.PrefetchScalarGridSpec(
            num_scalar_prefetch=0,
            grid=(segments, tiles_per_seg),
            in_specs=[pl.BlockSpec((row_tile, LANES), in_idx),
                      pl.BlockSpec((row_tile, LANES), in_idx)],
            out_specs=pl.BlockSpec((1, 8, LANES), lambda s, i: (s, 0, 0)),
        ),
        compiler_params=pltpu.CompilerParams(
            dimension_semantics=("parallel", "arbitrary"),
            vmem_limit_bytes=32 * 1024 * 1024),
    )(x, t)

    # alpha / n scaling stays in the wrapper: changing alpha (or just the
    # scale) never triggers a fresh Mosaic compile.
    return jnp.sum(out) * (float(alpha) / float(n_elem))


def _focal_loss_ref(inputs, targets, alpha=1.0, gamma=2):
    x = inputs.astype(jnp.float32)
    t = targets.astype(jnp.float32)
    bce = jnp.maximum(x, 0.0) - x * t + jnp.log1p(jnp.exp(-jnp.abs(x)))
    pt = jnp.exp(-bce)
    return jnp.mean(alpha * (1.0 - pt) ** gamma * bce)


if __name__ == "__main__":
    key = jax.random.PRNGKey(0)
    k1, k2, k3, k4, k5, k6 = jax.random.split(key, 6)
    tol = dict(rtol=5e-3, atol=1e-6)   # approx reciprocal on the binary path

    # 1) Canonical NCHW shape, hard {0,1} targets (module's intended use).
    x1 = jax.random.normal(k1, (2, 4, 16, 16), dtype=jnp.float32)
    t1 = (jax.random.uniform(k2, (2, 4, 16, 16)) > 0.5).astype(jnp.float32)
    got = jax.block_until_ready(focal_loss(x1, t1, alpha=1.0, gamma=2))
    ref = _focal_loss_ref(x1, t1, 1.0, 2)
    assert jnp.allclose(got, ref, **tol), (got, ref)

    # 2) Awkward size (945 elements): tiny lane pad + in-kernel tail mask.
    x2 = jax.random.normal(k3, (3, 5, 9, 7), dtype=jnp.float32)
    t2 = (jax.random.uniform(k4, (3, 5, 9, 7)) > 0.5).astype(jnp.float32)
    got = jax.block_until_ready(focal_loss(x2, t2, alpha=0.25, gamma=2))
    ref = _focal_loss_ref(x2, t2, 0.25, 2)
    assert jnp.allclose(got, ref, **tol), (got, ref)

    # 3) Multi-tile path: 2304 rows -> 3 tiles, 2 parallel segments, one gated
    #    overflow block, ragged last block + tail mask, output accumulation.
    x3 = jax.random.normal(k5, (4, 8, 96, 96), dtype=jnp.float32)
    t3 = (jax.random.uniform(k6, (4, 8, 96, 96)) > 0.5).astype(jnp.float32)
    got = jax.block_until_ready(focal_loss(x3, t3, alpha=1.0, gamma=2))
    ref = _focal_loss_ref(x3, t3, 1.0, 2)
    assert jnp.allclose(got, ref, **tol), (got, ref)

    # 4) Soft-target fallback path (exact exp(-bce); float gamma normalised).
    t1s = jax.random.uniform(k4, (2, 4, 16, 16), dtype=jnp.float32)
    got = jax.block_until_ready(
        focal_loss(x1, t1s, alpha=1.0, gamma=2.0, binary_targets=False))
    ref = _focal_loss_ref(x1, t1s, 1.0, 2.0)
    assert jnp.allclose(got, ref, rtol=1e-5, atol=1e-6), (got, ref)

    print("KERNEL_OK")
</pallas_src>

<mosaic_0001>
module attributes {stable_mosaic.version = 11 : i64} {
  func.func @_focal_loss_kernel(%arg0: i32, %arg1: i32, %arg2: memref<16x128xf32, #tpu.memory_space<vmem>>, %arg3: memref<16x128xf32, #tpu.memory_space<vmem>>, %arg4: memref<1x8x128xf32, #tpu.memory_space<vmem>>) attributes {dimension_semantics = [#tpu.dimension_semantics<parallel>, #tpu.dimension_semantics<arbitrary>], iteration_bounds = array<i64: 1, 1>, scalar_prefetch = 0 : i64, scratch_operands = 0 : i64, tpu.core_type = #tpu.core_type<tc>, window_params = [{transform_indices = @transform_0, window_bounds = array<i64: 16, 128>}, {transform_indices = @transform_1, window_bounds = array<i64: 16, 128>}, {transform_indices = @transform_2, window_bounds = array<i64: 1, 8, 128>}]} {
    %c0_i32 = arith.constant 0 : i32
    %0 = arith.cmpi eq, %arg1, %c0_i32 : i32
    %1 = arith.extui %0 : i1 to i32
    %c0_i32_0 = arith.constant 0 : i32
    %2 = arith.cmpi ne, %1, %c0_i32_0 : i32
    scf.if %2 {
      %cst_17 = arith.constant 0.000000e+00 : f32
      %36 = vector.broadcast %cst_17 : f32 to vector<1x8x128xf32>
      %c0_18 = arith.constant 0 : index
      %c0_19 = arith.constant 0 : index
      %c0_20 = arith.constant 0 : index
      %37 = vector.load %arg4[%c0_18, %c0_19, %c0_20] : memref<1x8x128xf32, #tpu.memory_space<vmem>>, vector<1x8x128xf32>
      tpu.vector_store %arg4[%c0_18, %c0_19, %c0_20], %36 {strides = array<i32>} : memref<1x8x128xf32, #tpu.memory_space<vmem>>, vector<1x8x128xf32>,
    } else {
    }
    %c0 = arith.constant 0 : index
    %c0_1 = arith.constant 0 : index
    %3 = vector.load %arg2[%c0, %c0_1] : memref<16x128xf32, #tpu.memory_space<vmem>>, vector<16x128xf32>
    %c0_2 = arith.constant 0 : index
    %c0_3 = arith.constant 0 : index
    %4 = vector.load %arg3[%c0_2, %c0_3] : memref<16x128xf32, #tpu.memory_space<vmem>>, vector<16x128xf32>
    %5 = math.absf %3 : vector<16x128xf32>
    %cst = arith.constant 0.000000e+00 : f32
    %6 = vector.broadcast %cst : f32 to vector<16x128xf32>
    %7 = arith.subf %6, %5 : vector<16x128xf32>
    %8 = math.exp %7 : vector<16x128xf32>
    %cst_4 = arith.constant 0.000000e+00 : f32
    %9 = vector.broadcast %cst_4 : f32 to vector<16x128xf32>
    %10 = arith.maximumf %3, %9 : vector<16x128xf32>
    %11 = arith.mulf %3, %4 : vector<16x128xf32>
    %12 = arith.subf %10, %11 : vector<16x128xf32>
    %13 = math.log1p %8 : vector<16x128xf32>
    %14 = arith.addf %12, %13 : vector<16x128xf32>
    %cst_5 = arith.constant 0.000000e+00 : f32
    %15 = vector.broadcast %cst_5 : f32 to vector<16x128xf32>
    %16 = arith.cmpf oge, %3, %15 : vector<16x128xf32>
    %cst_6 = arith.constant 5.000000e-01 : f32
    %17 = vector.broadcast %cst_6 : f32 to vector<16x128xf32>
    %18 = arith.cmpf oge, %4, %17 : vector<16x128xf32>
    %19 = arith.xori %16, %18 : vector<16x128xi1>
    %cst_7 = arith.constant 1.000000e+00 : f32
    %20 = vector.broadcast %cst_7 : f32 to vector<16x128xf32>
    %21 = arith.select %19, %8, %20 : vector<16x128xi1>, vector<16x128xf32>
    %cst_8 = arith.constant 1.000000e+00 : f32
    %22 = vector.broadcast %cst_8 : f32 to vector<16x128xf32>
    %23 = arith.addf %22, %8 : vector<16x128xf32>
    %24 = tpu.reciprocal %23 {approx = true} : vector<16x128xf32> -> vector<16x128xf32>
    %25 = arith.mulf %21, %24 : vector<16x128xf32>
    %cst_9 = arith.constant 1.000000e+00 : f32
    %26 = vector.broadcast %cst_9 : f32 to vector<16x128xf32>
    %27 = arith.subf %26, %25 : vector<16x128xf32>
    %28 = arith.mulf %27, %27 : vector<16x128xf32>
    %29 = arith.mulf %28, %14 : vector<16x128xf32>
    %c0_10 = arith.constant 0 : index
    %c0_11 = arith.constant 0 : index
    %c0_12 = arith.constant 0 : index
    %30 = vector.load %arg4[%c0_10, %c0_11, %c0_12] : memref<1x8x128xf32, #tpu.memory_space<vmem>>, vector<1x8x128xf32>
    %31 = vector.shape_cast %29 : vector<16x128xf32> to vector<2x8x128xf32>
    %cst_13 = arith.constant dense<0.000000e+00> : vector<8x128xf32>
    %32 = vector.multi_reduction <add>, %31, %cst_13 [0] : vector<2x8x128xf32> to vector<8x128xf32>
    %33 = vector.shape_cast %32 : vector<8x128xf32> to vector<1x8x128xf32>
    %34 = arith.addf %30, %33 : vector<1x8x128xf32>
    %c0_14 = arith.constant 0 : index
    %c0_15 = arith.constant 0 : index
    %c0_16 = arith.constant 0 : index
    %35 = vector.load %arg4[%c0_14, %c0_15, %c0_16] : memref<1x8x128xf32, #tpu.memory_space<vmem>>, vector<1x8x128xf32>
    tpu.vector_store %arg4[%c0_14, %c0_15, %c0_16], %34 {strides = array<i32>} : memref<1x8x128xf32, #tpu.memory_space<vmem>>, vector<1x8x128xf32>,
    return
  }
  func.func @transform_0(%arg0: i32, %arg1: i32) -> (i32, i32) {
    %c1_i32 = arith.constant 1 : i32
    %0 = arith.muli %arg0, %c1_i32 : i32
    %1 = arith.addi %0, %arg1 : i32
    %c0_i32 = arith.constant 0 : i32
    %c0_i32_0 = arith.constant 0 : i32
    return %1, %c0_i32 : i32, i32
  }
  func.func @transform_1(%arg0: i32, %arg1: i32) -> (i32, i32) {
    %c1_i32 = arith.constant 1 : i32
    %0 = arith.muli %arg0, %c1_i32 : i32
    %1 = arith.addi %0, %arg1 : i32
    %c0_i32 = arith.constant 0 : i32
    %c0_i32_0 = arith.constant 0 : i32
    return %1, %c0_i32 : i32, i32
  }
  func.func @transform_2(%arg0: i32, %arg1: i32) -> (i32, i32, i32) {
    %c0_i32 = arith.constant 0 : i32
    %c0_i32_0 = arith.constant 0 : i32
    %c0_i32_1 = arith.constant 0 : i32
    return %arg0, %c0_i32, %c0_i32_0 : i32, i32, i32
  }
}

</mosaic_0001>

<llo_original>
// kernel: tpu_custom_call.1
$region0: #{tpu_custom_call.1}
  #allocation0 [shape = 'u32[]', space=smem, size = 0x4, offset = 0x4, fixed_abs, tag = 'smem constant byte address 0x4 - core index']
  #allocation1 [shape = 'u32[72,128]{1,0:T(1,128)}', space=vmem, size = 0x9000, scoped, tag = 'internal scratch']
  %s0 = inlined_call_operand.hbm [shape: f32[16,128], index: 0, kind: input, shape index: {}]
  %s1 = inlined_call_operand.hbm [shape: f32[16,128], index: 1, kind: input, shape index: {}]
  %s2 = inlined_call_operand.hbm [shape: f32[1,8,128], index: 2, kind: output, shape index: {}]
  %s3 = sld [smem:[#allocation0]]
  $region30: #{tpu_custom_call.1} parent=0
    _
  %s5 = ssub.s32 1, %s3
  %s6 = scalar_select 0, %s5, %s3
  $region1: #{tpu_custom_call.1} parent=0
    #allocation2 [shape = 'u8[8192]{0}', space=vmem, size = 0x2000, scoped, tag = 'input window, operand 0, single buffered']
    #allocation3 [shape = 's32[1]{0}', space=sflag, size = 0x4, scoped, tag = 'scoped memory for tpu_custom_call.1']
    #allocation4 [shape = 's32[1]{0}', space=sflag, size = 0x4, scoped, tag = 'scoped memory for tpu_custom_call.1']
    #allocation5 [shape = 'u8[8192]{0}', space=vmem, size = 0x2000, scoped, tag = 'input window, operand 1, single buffered']
    #allocation6 [shape = 's32[1]{0}', space=sflag, size = 0x4, scoped, tag = 'scoped memory for tpu_custom_call.1']
    #allocation7 [shape = 'u8[4096]{0}', space=vmem, size = 0x1000, scoped, tag = 'output window, operand 0, single buffered']
    %7 = vsyncpa [#allocation3], 0
    %8 = vsyncpa [#allocation6], 0
    %9 = vsyncpa [#allocation4], 0
    // Predicated region
    $region2: #{tpu_custom_call.1} parent=1 // pred_check
      _
    $region3: #{tpu_custom_call.1} parent=1 // pred_check_branch
      %11 = sbr.rel (0) target = $region5
    $region4: #{tpu_custom_call.1} parent=1 // pred_region
      %s12 = sadd.s32 0, 0
      %s13 = smul.u32 2, %s12
      %15 = vsyncadd [#allocation3], 0
      %s16 = smul.addr %s13, 8
      %s17 = scalar_lea.hbm %s0, %s16
      %s18 = sshll.u32 %s17, 4
      %s19 = int_to_ptr.hbm [resolvable:$true] %s18
      %s20 = sshll.u32 [#allocation2], 4
      %s21 = int_to_ptr.vmem [resolvable:$true] %s20
      %26 = dma.hbm_to_vmem [thread:$0]  %s19, 256, %s21, [#allocation3], 128, 128, 8
    $region5: #{tpu_custom_call.1} parent=1 // pred_fallthru
      _
    // Predicated region
    $region6: #{tpu_custom_call.1} parent=1 // pred_check
      _
    $region7: #{tpu_custom_call.1} parent=1 // pred_check_branch
      %28 = sbr.rel (0) target = $region9
    $region8: #{tpu_custom_call.1} parent=1 // pred_region
      %s29 = sadd.s32 0, 0
      %s30 = smul.u32 2, %s29
      %32 = vsyncadd [#allocation6], 0
      %s33 = smul.addr %s30, 8
      %s34 = scalar_lea.hbm %s1, %s33
      %s35 = sshll.u32 %s34, 4
      %s36 = int_to_ptr.hbm [resolvable:$true] %s35
      %s37 = sshll.u32 [#allocation5], 4
      %s38 = int_to_ptr.vmem [resolvable:$true] %s37
      %43 = dma.hbm_to_vmem [thread:$0]  %s36, 256, %s38, [#allocation6], 128, 128, 8
    $region9: #{tpu_custom_call.1} parent=1 // pred_fallthru
      _
    // Predicated region
    $region10: #{tpu_custom_call.1} parent=1 // pred_check
      _
    $region11: #{tpu_custom_call.1} parent=1 // pred_check_branch
      %45 = sbr.rel (0) target = $region13
    $region12: #{tpu_custom_call.1} parent=1 // pred_region
      %47 = dma.done [#allocation3], 256
    $region13: #{tpu_custom_call.1} parent=1 // pred_fallthru
      _
    // Predicated region
    $region14: #{tpu_custom_call.1} parent=1 // pred_check
      _
    $region15: #{tpu_custom_call.1} parent=1 // pred_check_branch
      %49 = sbr.rel (0) target = $region17
    $region16: #{tpu_custom_call.1} parent=1 // pred_region
      %51 = dma.done [#allocation6], 256
    $region17: #{tpu_custom_call.1} parent=1 // pred_fallthru
      _
    %s52 = sadd.s32 0, 0
    %s53 = smul.u32 2, %s52
    %s54 = sadd.s32 0, 0
    %s55 = smul.u32 2, %s54
    %p56 = scmp.eq.s32.totalorder 0, 0
    // Predicated region
    $region18: #{tpu_custom_call.1} parent=1 // pred_check
      %p57 = pneg %p56
    $region19: #{tpu_custom_call.1} parent=1 // pred_check_branch
      %59 = sbr.rel (%p57) target = $region21
    $region20: #{tpu_custom_call.1} parent=1 // pred_region
      %60 = vst [vmem:[#allocation7] sm:$0xff] 0.0
    $region21: #{tpu_custom_call.1} parent=1 // pred_fallthru
      _
    %v61 = vld [vmem:[#allocation2] sm:$0xff]
    %v62 = vld [vmem:[#allocation2 + $0x8] sm:$0xff]
    %v63 = vld [vmem:[#allocation5] sm:$0xff]
    %v64 = vld [vmem:[#allocation5 + $0x8] sm:$0xff]
    %v65 = vand.u32 2147483647, %v61
    %v66 = vand.u32 2147483647, %v62
    %v67 = vsub.f32 0.0, %v65
    %v68 = vsub.f32 0.0, %v66
    %v69 = vmul.f32 %v67, 1.442695
    %v70 = vpow.pop %v69
    %v71 = vmul.f32 %v68, 1.442695
    %v72 = vpow.pop %v71
    %v73 = vmax.f32 %v61, 0.0
    %v74 = vmax.f32 %v62, 0.0
    %v75 = vmul.f32 %v61, %v63
    %v76 = vmul.f32 %v62, %v64
    %v77 = vsub.f32 %v73, %v75
    %v78 = vsub.f32 %v74, %v76
    %v79 = vadd.f32 %v70, 1.0
    %v80 = vlog2.pop %v79
    %v81 = vmul.f32 %v80, 0.6931472
    %v82 = vmul.f32 -0.5, %v70
    %v83 = vadd.f32 %v82, 1.0
    %v84 = vmul.f32 %v83, %v70
    %v85 = vand.u32 2147483647, %v70
    %vm86 = vcmp.lt.f32.partialorder %v85, 0.0004427343
    %v87 = vsel %vm86, %v84, %v81
    %v88 = vadd.f32 %v72, 1.0
    %v89 = vlog2.pop %v88
    %v90 = vmul.f32 %v89, 0.6931472
    %v91 = vmul.f32 -0.5, %v72
    %v92 = vadd.f32 %v91, 1.0
    %v93 = vmul.f32 %v92, %v72
    %v94 = vand.u32 2147483647, %v72
    %vm95 = vcmp.lt.f32.partialorder %v94, 0.0004427343
    %v96 = vsel %vm95, %v93, %v90
    %v97 = vadd.f32 %v77, %v87
    %v98 = vadd.f32 %v78, %v96
    %vm99 = vcmp.ge.f32.partialorder %v61, 0.0
    %vm100 = vcmp.ge.f32.partialorder %v62, 0.0
    %vm101 = vcmp.ge.f32.partialorder %v63, 0.5
    %vm102 = vcmp.ge.f32.partialorder %v64, 0.5
    %vm103 = vmxor %vm99, %vm101
    %vm104 = vmxor %vm100, %vm102
    %v105 = vsel %vm103, %v70, 1.0
    %v106 = vsel %vm104, %v72, 1.0
    %v107 = vadd.f32 %v70, 1.0
    %v108 = vadd.f32 %v72, 1.0
    %v109 = vrcp.pop %v107
    %v110 = vrcp.pop %v108
    %v111 = vmul.f32 %v105, %v109
    %v112 = vmul.f32 %v106, %v110
    %v113 = vsub.f32 1.0, %v111
    %v114 = vsub.f32 1.0, %v112
    %v115 = vmul.f32 %v113, %v113
    %v116 = vmul.f32 %v114, %v114
    %v117 = vmul.f32 %v115, %v97
    %v118 = vmul.f32 %v116, %v98
    %v119 = vld [vmem:[#allocation7] sm:$0xff]
    %v120 = vadd.f32 %v117, %v118
    %v121 = vadd.f32 %v119, %v120
    %122 = vst [vmem:[#allocation7] sm:$0xff] %v121
    // Predicated region
    $region22: #{tpu_custom_call.1} parent=1 // pred_check
      _
    $region23: #{tpu_custom_call.1} parent=1 // pred_check_branch
      %124 = sbr.rel (0) target = $region25
    $region24: #{tpu_custom_call.1} parent=1 // pred_region
      %126 = vsyncadd [#allocation4], 0
      %s128 = sshll.u32 [#allocation7], 4
      %s129 = int_to_ptr.vmem [resolvable:$true] %s128
      %s130 = sshll.u32 %s2, 4
      %s131 = int_to_ptr.hbm [resolvable:$true] %s130
      %133 = dma.vmem_to_hbm [thread:$0]  %s129, 128, %s131, [#allocation4]
    $region25: #{tpu_custom_call.1} parent=1 // pred_fallthru
      _
    // Predicated region
    $region26: #{tpu_custom_call.1} parent=1 // pred_check
      _
    $region27: #{tpu_custom_call.1} parent=1 // pred_check_branch
      %135 = sbr.rel (0) target = $region29
    $region28: #{tpu_custom_call.1} parent=1 // pred_region
      %137 = dma.done [#allocation4], 128
    $region29: #{tpu_custom_call.1} parent=1 // pred_fallthru
      _
    %138 = vsyncpa [#allocation3], 1
    %139 = vsyncpa [#allocation6], 1
    %140 = vsyncpa [#allocation4], 1

</llo_original>
